<compile_context>
chip_gen: v6e
topology: v6e:2x2x1
jax: 0.10.0
libtpu: 0.0.40
codegen_flags: <defaults>
</compile_context>

<pallas_src>
import numpy as np
import jax
import jax.numpy as jnp
from jax.experimental import pallas as pl
from jax.experimental.pallas import tpu as pltpu


# -----------------------------------------------------------------------------
# Pallas kernel: two small MXU matmuls + GRU gate math on a lane-dense tile
# -----------------------------------------------------------------------------
def convgru_kernel(h_ref, x_ref, w_hh_ref, w_ih_ref, b_ref, out_ref):
    # h_ref   : (Ch,  tm)    hidden tile   (channels on sublanes, pixels on lanes)
    # x_ref   : (Cin, tm)    input tile
    # w_hh_ref: (4*Ch, Ch)   fused hidden->gate weight, rows [r; z; 0; c]
    # w_ih_ref: (4*Ch, Cin)  fused input ->gate weight, rows [r; z; c; 0]
    # b_ref   : (4*Ch, 1)    fused bias (f32),          rows [b_r; b_z; 0; b_c]
    # out_ref : (Ch,  tm)
    C = out_ref.shape[0]

    # All gate pre-activations in one shot, f32 accumulation on the MXU.
    g = (jnp.dot(w_hh_ref[...], h_ref[...], preferred_element_type=jnp.float32)
         + jnp.dot(w_ih_ref[...], x_ref[...], preferred_element_type=jnp.float32)
         + b_ref[...])

    reset  = jax.nn.sigmoid(g[0 * C:1 * C, :])   # sigmoid(i_r + h_r)
    update = jax.nn.sigmoid(g[1 * C:2 * C, :])   # sigmoid(i_z + h_z)
    i_c    = g[2 * C:3 * C, :]                   # w_ih_c @ x
    h_c    = g[3 * C:4 * C, :]                   # w_hh_c @ h + b_c

    h = h_ref[...].astype(jnp.float32)
    cand = jnp.tanh(i_c + reset * h_c)
    out_ref[...] = (cand + update * (h - cand)).astype(out_ref.dtype)


# -----------------------------------------------------------------------------
# One-time parameter fusion (hoist out of any per-timestep loop / scan body)
# -----------------------------------------------------------------------------
def build_convgru_params(w_ih, w_hh, b_hh, dtype=None):
    """Fuse the 1x1 conv weights into the layout the kernel expects.

    w_ih : (3*Ch, Cin)  conv_ih weight (1x1 kernel squeezed), no bias
    w_hh : (3*Ch, Ch)   conv_hh weight (1x1 kernel squeezed)
    b_hh : (3*Ch,)      conv_hh bias
    dtype: optional compute dtype for the weight slabs (e.g. jnp.bfloat16)
    """
    Ch = w_hh.shape[1]
    Cin = w_ih.shape[1]
    dt = dtype if dtype is not None else w_hh.dtype

    w_hh_r, w_hh_z, w_hh_c = w_hh[:Ch], w_hh[Ch:2 * Ch], w_hh[2 * Ch:]
    w_ih_r, w_ih_z, w_ih_c = w_ih[:Ch], w_ih[Ch:2 * Ch], w_ih[2 * Ch:]

    w_hh_big = jnp.concatenate(
        [w_hh_r, w_hh_z, jnp.zeros((Ch, Ch), w_hh.dtype), w_hh_c], axis=0
    ).astype(dt)                                               # (4*Ch, Ch)
    w_ih_big = jnp.concatenate(
        [w_ih_r, w_ih_z, w_ih_c, jnp.zeros((Ch, Cin), w_ih.dtype)], axis=0
    ).astype(dt)                                               # (4*Ch, Cin)
    b_big = jnp.concatenate(
        [b_hh[:Ch], b_hh[Ch:2 * Ch], jnp.zeros((Ch,), b_hh.dtype), b_hh[2 * Ch:]]
    ).reshape(4 * Ch, 1).astype(jnp.float32)                   # (4*Ch, 1), f32 bias

    return w_hh_big, w_ih_big, b_big


# -----------------------------------------------------------------------------
# Wrapper: free reshapes only, grid over (batch, pixel tiles)
# -----------------------------------------------------------------------------
def conv_gru(x, hidden, params, *, tm=1024):
    """ConvGRU forward with 1x1 convs.

    x      : (B, Cin, H, W)
    hidden : (B, Ch,  H, W)
    params : (w_hh_big, w_ih_big, b_big) from build_convgru_params
    returns: (B, Ch, H, W)   (dtype of `hidden`)
    """
    B, Cin, H, W = x.shape
    Ch = hidden.shape[1]
    HW = H * W
    w_hh_big, w_ih_big, b_big = params
    out_dtype = hidden.dtype

    # Free, contiguous reshapes (no HBM copies).
    x_r = x.reshape(B, Cin, HW)
    h_r = hidden.reshape(B, Ch, HW)

    # Lane tile: multiple of 128, clamped to the (rounded-up) image size.
    tm = max(128, min(int(tm), pl.cdiv(HW, 128) * 128))
    grid = (B, pl.cdiv(HW, tm))

    out = pl.pallas_call(
        convgru_kernel,
        out_shape=jax.ShapeDtypeStruct((B, Ch, HW), out_dtype),
        grid=grid,
        in_specs=[
            # activations: batch dim squeezed, lane-dense pixel tiles
            pl.BlockSpec((pl.Squeezed(), Ch, tm), lambda b, i: (b, 0, i)),
            pl.BlockSpec((pl.Squeezed(), Cin, tm), lambda b, i: (b, 0, i)),
            # grid-invariant fused weights / bias (stay resident in VMEM)
            pl.BlockSpec((4 * Ch, Ch), lambda b, i: (0, 0)),
            pl.BlockSpec((4 * Ch, Cin), lambda b, i: (0, 0)),
            pl.BlockSpec((4 * Ch, 1), lambda b, i: (0, 0)),
        ],
        out_specs=pl.BlockSpec((pl.Squeezed(), Ch, tm), lambda b, i: (b, 0, i)),
        compiler_params=pltpu.CompilerParams(
            dimension_semantics=("parallel", "parallel")),
    )(h_r, x_r, w_hh_big, w_ih_big, b_big)

    return out.reshape(B, Ch, H, W)


# -----------------------------------------------------------------------------
# Pure-JAX reference (mirrors the PyTorch module exactly, NCHW)
# -----------------------------------------------------------------------------
def convgru_reference(x, hidden, w_ih, w_hh, b_hh):
    Ch = hidden.shape[1]
    gi = jnp.einsum('oc,bchw->bohw', w_ih, x)                        # conv_ih (no bias)
    gh = jnp.einsum('oc,bchw->bohw', w_hh, hidden) + b_hh[None, :, None, None]
    i_r, i_z, i_c = gi[:, :Ch], gi[:, Ch:2 * Ch], gi[:, 2 * Ch:]
    h_r, h_z, h_c = gh[:, :Ch], gh[:, Ch:2 * Ch], gh[:, 2 * Ch:]
    reset = jax.nn.sigmoid(i_r + h_r)
    update = jax.nn.sigmoid(i_z + h_z)
    cand = jnp.tanh(i_c + reset * h_c)
    return cand + update * (hidden - cand)


if __name__ == "__main__":
    B, Cin, H, W = 2, 4, 16, 16
    Ch = 32

    key = jax.random.PRNGKey(0)
    kx, kh, kwi, kwh, kb = jax.random.split(key, 5)

    x = jax.random.normal(kx, (B, Cin, H, W), dtype=jnp.float32)
    hidden = jax.random.normal(kh, (B, Ch, H, W), dtype=jnp.float32)

    # Deterministic "parameters" (Conv2d 1x1 weights with the trailing 1x1 squeezed).
    w_ih = jax.random.normal(kwi, (3 * Ch, Cin), dtype=jnp.float32) / np.sqrt(Cin)
    w_hh = jax.random.normal(kwh, (3 * Ch, Ch), dtype=jnp.float32) / np.sqrt(Ch)
    b_hh = 0.1 * jax.random.normal(kb, (3 * Ch,), dtype=jnp.float32)

    ref = jax.block_until_ready(convgru_reference(x, hidden, w_ih, w_hh, b_hh))

    # --- f32 path (tight tolerance) ------------------------------------------
    params_f32 = build_convgru_params(w_ih, w_hh, b_hh)               # built once
    out = jax.block_until_ready(conv_gru(x, hidden, params_f32))
    np.testing.assert_allclose(np.asarray(out), np.asarray(ref), rtol=1e-4, atol=1e-5)

    # --- bf16 activation/weight path (halves HBM traffic; loose tolerance) ---
    params_bf16 = build_convgru_params(w_ih, w_hh, b_hh, dtype=jnp.bfloat16)
    out_bf16 = jax.block_until_ready(
        conv_gru(x.astype(jnp.bfloat16), hidden.astype(jnp.bfloat16), params_bf16))
    np.testing.assert_allclose(np.asarray(out_bf16, dtype=np.float32),
                               np.asarray(ref), rtol=5e-2, atol=5e-2)

    print("KERNEL_OK")
</pallas_src>

<mosaic_0001>
module attributes {stable_mosaic.version = 11 : i64} {
  func.func @convgru_kernel(%arg0: i32, %arg1: i32, %arg2: memref<1x32x256xf32, #tpu.memory_space<vmem>>, %arg3: memref<1x4x256xf32, #tpu.memory_space<vmem>>, %arg4: memref<128x32xf32, #tpu.memory_space<vmem>>, %arg5: memref<128x4xf32, #tpu.memory_space<vmem>>, %arg6: memref<128x1xf32, #tpu.memory_space<vmem>>, %arg7: memref<1x32x256xf32, #tpu.memory_space<vmem>>) attributes {dimension_semantics = [#tpu.dimension_semantics<parallel>, #tpu.dimension_semantics<parallel>], iteration_bounds = array<i64: 2, 1>, scalar_prefetch = 0 : i64, scratch_operands = 0 : i64, tpu.core_type = #tpu.core_type<tc>, window_params = [{transform_indices = @transform_0, window_bounds = array<i64: 1, 32, 256>}, {transform_indices = @transform_1, window_bounds = array<i64: 1, 4, 256>}, {pipeline_mode = #tpu.pipeline_mode<synchronous>, transform_indices = @transform_2, window_bounds = array<i64: 128, 32>}, {pipeline_mode = #tpu.pipeline_mode<synchronous>, transform_indices = @transform_3, window_bounds = array<i64: 128, 4>}, {pipeline_mode = #tpu.pipeline_mode<synchronous>, transform_indices = @transform_4, window_bounds = array<i64: 128, 1>}, {transform_indices = @transform_5, window_bounds = array<i64: 1, 32, 256>}]} {
    %c0 = arith.constant 0 : index
    %c0_0 = arith.constant 0 : index
    %0 = vector.load %arg4[%c0, %c0_0] : memref<128x32xf32, #tpu.memory_space<vmem>>, vector<128x32xf32>
    %c0_1 = arith.constant 0 : index
    %c0_2 = arith.constant 0 : index
    %c0_3 = arith.constant 0 : index
    %1 = vector.load %arg2[%c0_1, %c0_2, %c0_3] : memref<1x32x256xf32, #tpu.memory_space<vmem>>, vector<1x32x256xf32>
    %2 = vector.shape_cast %1 : vector<1x32x256xf32> to vector<32x256xf32>
    %cst = arith.constant dense<0.000000e+00> : vector<128x256xf32>
    %3 = tpu.matmul %0, %2, %cst {dimension_numbers = #tpu.dot_dimension_numbers<[1], [0], [0], [1], [0, 0, 1, 1], [], []>} : vector<128x32xf32>, vector<32x256xf32>, vector<128x256xf32> -> vector<128x256xf32>
    %c0_4 = arith.constant 0 : index
    %c0_5 = arith.constant 0 : index
    %4 = vector.load %arg5[%c0_4, %c0_5] : memref<128x4xf32, #tpu.memory_space<vmem>>, vector<128x4xf32>
    %c0_6 = arith.constant 0 : index
    %c0_7 = arith.constant 0 : index
    %c0_8 = arith.constant 0 : index
    %5 = vector.load %arg3[%c0_6, %c0_7, %c0_8] : memref<1x4x256xf32, #tpu.memory_space<vmem>>, vector<1x4x256xf32>
    %6 = vector.shape_cast %5 : vector<1x4x256xf32> to vector<4x256xf32>
    %cst_9 = arith.constant dense<0.000000e+00> : vector<128x256xf32>
    %7 = tpu.matmul %4, %6, %cst_9 {dimension_numbers = #tpu.dot_dimension_numbers<[1], [0], [0], [1], [0, 0, 1, 1], [], []>} : vector<128x4xf32>, vector<4x256xf32>, vector<128x256xf32> -> vector<128x256xf32>
    %8 = arith.addf %3, %7 : vector<128x256xf32>
    %c0_10 = arith.constant 0 : index
    %c0_11 = arith.constant 0 : index
    %9 = vector.load %arg6[%c0_10, %c0_11] : memref<128x1xf32, #tpu.memory_space<vmem>>, vector<128x1xf32>
    %10 = vector.broadcast %9 : vector<128x1xf32> to vector<128x256xf32>
    %11 = arith.addf %8, %10 : vector<128x256xf32>
    %12 = vector.extract_strided_slice %11 {offsets = [0, 0], sizes = [32, 256], strides = [1, 1]} : vector<128x256xf32> to vector<32x256xf32>
    %13 = arith.negf %12 : vector<32x256xf32>
    %14 = math.exp %13 : vector<32x256xf32>
    %cst_12 = arith.constant 1.000000e+00 : f32
    %15 = vector.broadcast %cst_12 : f32 to vector<32x256xf32>
    %16 = arith.addf %15, %14 : vector<32x256xf32>
    %17 = arith.divf %15, %16 : vector<32x256xf32>
    %18 = vector.extract_strided_slice %11 {offsets = [32, 0], sizes = [32, 256], strides = [1, 1]} : vector<128x256xf32> to vector<32x256xf32>
    %19 = arith.negf %18 : vector<32x256xf32>
    %20 = math.exp %19 : vector<32x256xf32>
    %cst_13 = arith.constant 1.000000e+00 : f32
    %21 = vector.broadcast %cst_13 : f32 to vector<32x256xf32>
    %22 = arith.addf %21, %20 : vector<32x256xf32>
    %23 = arith.divf %21, %22 : vector<32x256xf32>
    %24 = vector.extract_strided_slice %11 {offsets = [64, 0], sizes = [32, 256], strides = [1, 1]} : vector<128x256xf32> to vector<32x256xf32>
    %25 = vector.extract_strided_slice %11 {offsets = [96, 0], sizes = [32, 256], strides = [1, 1]} : vector<128x256xf32> to vector<32x256xf32>
    %c0_14 = arith.constant 0 : index
    %c0_15 = arith.constant 0 : index
    %c0_16 = arith.constant 0 : index
    %26 = vector.load %arg2[%c0_14, %c0_15, %c0_16] : memref<1x32x256xf32, #tpu.memory_space<vmem>>, vector<1x32x256xf32>
    %27 = vector.shape_cast %26 : vector<1x32x256xf32> to vector<32x256xf32>
    %28 = arith.mulf %17, %25 : vector<32x256xf32>
    %29 = arith.addf %24, %28 : vector<32x256xf32>
    %30 = math.tanh %29 : vector<32x256xf32>
    %31 = arith.subf %27, %30 : vector<32x256xf32>
    %32 = arith.mulf %23, %31 : vector<32x256xf32>
    %33 = arith.addf %30, %32 : vector<32x256xf32>
    %c0_17 = arith.constant 0 : index
    %c0_18 = arith.constant 0 : index
    %c0_19 = arith.constant 0 : index
    %34 = vector.load %arg7[%c0_17, %c0_18, %c0_19] : memref<1x32x256xf32, #tpu.memory_space<vmem>>, vector<1x32x256xf32>
    %35 = vector.shape_cast %34 : vector<1x32x256xf32> to vector<32x256xf32>
    %36 = vector.shape_cast %33 : vector<32x256xf32> to vector<1x32x256xf32>
    tpu.vector_store %arg7[%c0_17, %c0_18, %c0_19], %36 {strides = array<i32>} : memref<1x32x256xf32, #tpu.memory_space<vmem>>, vector<1x32x256xf32>,
    return
  }
  func.func @transform_0(%arg0: i32, %arg1: i32) -> (i32, i32, i32) {
    %c0_i32 = arith.constant 0 : i32
    %c0_i32_0 = arith.constant 0 : i32
    return %arg0, %c0_i32, %arg1 : i32, i32, i32
  }
  func.func @transform_1(%arg0: i32, %arg1: i32) -> (i32, i32, i32) {
    %c0_i32 = arith.constant 0 : i32
    %c0_i32_0 = arith.constant 0 : i32
    return %arg0, %c0_i32, %arg1 : i32, i32, i32
  }
  func.func @transform_2(%arg0: i32, %arg1: i32) -> (i32, i32) {
    %c0_i32 = arith.constant 0 : i32
    %c0_i32_0 = arith.constant 0 : i32
    %c0_i32_1 = arith.constant 0 : i32
    return %c0_i32, %c0_i32_0 : i32, i32
  }
  func.func @transform_3(%arg0: i32, %arg1: i32) -> (i32, i32) {
    %c0_i32 = arith.constant 0 : i32
    %c0_i32_0 = arith.constant 0 : i32
    %c0_i32_1 = arith.constant 0 : i32
    return %c0_i32, %c0_i32_0 : i32, i32
  }
  func.func @transform_4(%arg0: i32, %arg1: i32) -> (i32, i32) {
    %c0_i32 = arith.constant 0 : i32
    %c0_i32_0 = arith.constant 0 : i32
    %c0_i32_1 = arith.constant 0 : i32
    return %c0_i32, %c0_i32_0 : i32, i32
  }
  func.func @transform_5(%arg0: i32, %arg1: i32) -> (i32, i32, i32) {
    %c0_i32 = arith.constant 0 : i32
    %c0_i32_0 = arith.constant 0 : i32
    return %arg0, %c0_i32, %arg1 : i32, i32, i32
  }
}

</mosaic_0001>

<llo_original>
// kernel: tpu_custom_call.1
$region0: #{tpu_custom_call.1}
  #allocation0 [shape = 'u32[]', space=smem, size = 0x4, offset = 0x4, fixed_abs, tag = 'smem constant byte address 0x4 - core index']
  #allocation1 [shape = 'u32[144,128]{1,0:T(1,128)}', space=vmem, size = 0x12000, scoped, tag = 'internal scratch']
  %s0 = inlined_call_operand.vmem [shape: f32[2,32,256], index: 0, kind: input, shape index: {}]
  %s1 = inlined_call_operand.vmem [shape: f32[2,4,256], index: 1, kind: input, shape index: {}]
  %s2 = inlined_call_operand.vmem [shape: f32[128,32], index: 2, kind: input, shape index: {}]
  %s3 = inlined_call_operand.vmem [shape: f32[128,4], index: 3, kind: input, shape index: {}]
  %s4 = inlined_call_operand.vmem [shape: f32[128,1], index: 4, kind: input, shape index: {}]
  %s5 = inlined_call_operand.hbm [shape: f32[2,32,256], index: 5, kind: output, shape index: {}]
  %s6 = sld [smem:[#allocation0]]
  $region53: #{tpu_custom_call.1} parent=0
    _
  %s8 = ssub.s32 1, %s6
  %s9 = scalar_select 0, %s8, %s6
  $region1: #{tpu_custom_call.1} parent=0
    #allocation2 [shape = 'u8[65536]{0}', space=vmem, size = 0x10000, scoped, tag = 'output window, operand 0']
    #allocation3 [shape = 's32[2]{0}', space=sflag, size = 0x8, scoped, tag = 'scoped memory for tpu_custom_call.1']
    %10 = vsyncpa [#allocation3], 0
    %s11 = scalar_lea.sflag [#allocation3], 1
    %12 = vsyncpa %s11, 0
    loop: start=0, step=1, limit=4
    $region2: #{tpu_custom_call.1} parent=1 // loop_pre_header
      _
    $region3: #{tpu_custom_call.1} parent=1 // loop_header
      %s14 = sphi 0, %s18
      %p15 = scmp.ge.s32.totalorder %s14, 4
      %s21 = sphi 0, %s33
      %s22 = sphi 0, %s29
      %s23 = sphi 0, %s21
      %s24 = sphi 0, %s22
      %s25 = sphi 0, %s23
      %s26 = sphi 0, %s24
      %s38 = sphi 0, %s40
      %s41 = sphi 0, %s38
      %s42 = sphi 0, %s41
      %s58 = sphi 0, %s42
      %s66 = sphi 0, %s68
      %s69 = sphi 0, %s66
      %s70 = sphi 0, %s69
      %s86 = sphi 0, %s70
      %s90 = sphi 0, %s90
      %s92 = sphi 0, %s90
      %s93 = sphi 0, %s92
      %s107 = sphi 0, %s93
      %s111 = sphi 0, %s111
      %s113 = sphi 0, %s111
      %s114 = sphi 0, %s113
      %s128 = sphi 0, %s114
      %s132 = sphi 0, %s132
      %s134 = sphi 0, %s132
      %s135 = sphi 0, %s134
      %s149 = sphi 0, %s135
      %s157 = sphi 0, %s159
      %s160 = sphi 0, %s157
      %s161 = sphi 0, %s160
      %s177 = sphi 0, %s161
    $region4: #{tpu_custom_call.1} parent=1 // loop_header_branch
      %17 = sbr.rel (%p15) target = $region8
    $region5: #{tpu_custom_call.1} parent=1 // loop_body
      %s19 = ssub.s32 %s14, 1
      %s20 = ssub.s32 %s14, 2
      %s27 = sadd.s32 1, %s22
      %p28 = scmp.ge.s32.totalorder %s27, 1
      %s29 = scalar_select %p28, 0, %s27
      %s30 = sadd.s32 1, %s21
      %s31 = scalar_select %p28, %s30, %s21
      %p32 = scmp.ge.s32.totalorder %s31, 2
      %s33 = scalar_select %p32, 0, %s31
      %s34 = ssub.s32 %s21, %s33
      %s35 = ssub.s32 %s22, %s29
      %s36 = sor.u32 %s34, %s35
      %p37 = scmp.eq.s32.totalorder %s36, 0
      %s39 = sadd.s32 %s38, 1
      %s40 = scalar_select %p37, %s38, %s39
      %p43 = pneg %p37
      %p44 = scmp.eq.s32.totalorder %s14, 1
      %p45 = por %p43, %p44
      %p46 = scmp.ne.s32.totalorder %s38, %s41
      %p47 = scmp.eq.s32.totalorder %s14, 0
      %p48 = por %p46, %p47
      %p49 = scmp.ne.s32.totalorder %s38, %s41
      %p50 = scmp.eq.s32.totalorder %s19, 1
      %p51 = por %p49, %p50
      %p52 = scmp.ne.s32.totalorder %s41, %s42
      %p53 = scmp.eq.s32.totalorder %s19, 0
      %p54 = por %p52, %p53
      %p55 = scmp.ne.s32.totalorder %s41, %s42
      %p56 = scmp.eq.s32.totalorder %s20, 1
      %p57 = por %p55, %p56
      %p59 = scmp.ne.s32.totalorder %s42, %s58
      %p60 = scmp.eq.s32.totalorder %s20, 0
      %p61 = por %p59, %p60
      %s62 = ssub.s32 %s21, %s33
      %s63 = ssub.s32 %s22, %s29
      %s64 = sor.u32 %s62, %s63
      %p65 = scmp.eq.s32.totalorder %s64, 0
      %s67 = sadd.s32 %s66, 1
      %s68 = scalar_select %p65, %s66, %s67
      %p71 = pneg %p65
      %p72 = scmp.eq.s32.totalorder %s14, 1
      %p73 = por %p71, %p72
      %p74 = scmp.ne.s32.totalorder %s66, %s69
      %p75 = scmp.eq.s32.totalorder %s14, 0
      %p76 = por %p74, %p75
      %p77 = scmp.ne.s32.totalorder %s66, %s69
      %p78 = scmp.eq.s32.totalorder %s19, 1
      %p79 = por %p77, %p78
      %p80 = scmp.ne.s32.totalorder %s69, %s70
      %p81 = scmp.eq.s32.totalorder %s19, 0
      %p82 = por %p80, %p81
      %p83 = scmp.ne.s32.totalorder %s69, %s70
      %p84 = scmp.eq.s32.totalorder %s20, 1
      %p85 = por %p83, %p84
      %p87 = scmp.ne.s32.totalorder %s70, %s86
      %p88 = scmp.eq.s32.totalorder %s20, 0
      %p89 = por %p87, %p88
      %s91 = sadd.s32 %s90, 1
      %p94 = scmp.eq.s32.totalorder %s14, 1
      %p95 = scmp.ne.s32.totalorder %s90, %s92
      %p96 = scmp.eq.s32.totalorder %s14, 0
      %p97 = por %p95, %p96
      %p98 = scmp.ne.s32.totalorder %s90, %s92
      %p99 = scmp.eq.s32.totalorder %s19, 1
      %p100 = por %p98, %p99
      %p101 = scmp.ne.s32.totalorder %s92, %s93
      %p102 = scmp.eq.s32.totalorder %s19, 0
      %p103 = por %p101, %p102
      %p104 = scmp.ne.s32.totalorder %s92, %s93
      %p105 = scmp.eq.s32.totalorder %s20, 1
      %p106 = por %p104, %p105
      %p108 = scmp.ne.s32.totalorder %s93, %s107
      %p109 = scmp.eq.s32.totalorder %s20, 0
      %p110 = por %p108, %p109
      %s112 = sadd.s32 %s111, 1
      %p115 = scmp.eq.s32.totalorder %s14, 1
      %p116 = scmp.ne.s32.totalorder %s111, %s113
      %p117 = scmp.eq.s32.totalorder %s14, 0
      %p118 = por %p116, %p117
      %p119 = scmp.ne.s32.totalorder %s111, %s113
      %p120 = scmp.eq.s32.totalorder %s19, 1
      %p121 = por %p119, %p120
      %p122 = scmp.ne.s32.totalorder %s113, %s114
      %p123 = scmp.eq.s32.totalorder %s19, 0
      %p124 = por %p122, %p123
      %p125 = scmp.ne.s32.totalorder %s113, %s114
      %p126 = scmp.eq.s32.totalorder %s20, 1
      %p127 = por %p125, %p126
      %p129 = scmp.ne.s32.totalorder %s114, %s128
      %p130 = scmp.eq.s32.totalorder %s20, 0
      %p131 = por %p129, %p130
      %s133 = sadd.s32 %s132, 1
      %p136 = scmp.eq.s32.totalorder %s14, 1
      %p137 = scmp.ne.s32.totalorder %s132, %s134
      %p138 = scmp.eq.s32.totalorder %s14, 0
      %p139 = por %p137, %p138
      %p140 = scmp.ne.s32.totalorder %s132, %s134
      %p141 = scmp.eq.s32.totalorder %s19, 1
      %p142 = por %p140, %p141
      %p143 = scmp.ne.s32.totalorder %s134, %s135
      %p144 = scmp.eq.s32.totalorder %s19, 0
      %p145 = por %p143, %p144
      %p146 = scmp.ne.s32.totalorder %s134, %s135
      %p147 = scmp.eq.s32.totalorder %s20, 1
      %p148 = por %p146, %p147
      %p150 = scmp.ne.s32.totalorder %s135, %s149
      %p151 = scmp.eq.s32.totalorder %s20, 0
      %p152 = por %p150, %p151
      %s153 = ssub.s32 %s21, %s33
      %s154 = ssub.s32 %s22, %s29
      %s155 = sor.u32 %s153, %s154
      %p156 = scmp.eq.s32.totalorder %s155, 0
      %s158 = sadd.s32 %s157, 1
      %s159 = scalar_select %p156, %s157, %s158
      %p162 = pneg %p156
      %p163 = scmp.eq.s32.totalorder %s14, 1
      %p164 = por %p162, %p163
      %p165 = scmp.ne.s32.totalorder %s157, %s160
      %p166 = scmp.eq.s32.totalorder %s14, 0
      %p167 = por %p165, %p166
      %p168 = scmp.ne.s32.totalorder %s157, %s160
      %p169 = scmp.eq.s32.totalorder %s19, 1
      %p170 = por %p168, %p169
      %p171 = scmp.ne.s32.totalorder %s160, %s161
      %p172 = scmp.eq.s32.totalorder %s19, 0
      %p173 = por %p171, %p172
      %p174 = scmp.ne.s32.totalorder %s160, %s161
      %p175 = scmp.eq.s32.totalorder %s20, 1
      %p176 = por %p174, %p175
      %p178 = scmp.ne.s32.totalorder %s161, %s177
      %p179 = scmp.eq.s32.totalorder %s20, 0
      %p180 = por %p178, %p179
      %p181 = scmp.le.s32.totalorder 1, %s14
      %p182 = scmp.lt.s32.totalorder %s14, 3
      %p183 = pnand %p181, %p182
      %p184 = pneg %p183
      // Predicated region
      $region9: #{tpu_custom_call.1} parent=5 // pred_check
        _
      $region10: #{tpu_custom_call.1} parent=5 // pred_check_branch
        %186 = sbr.rel (%p183) target = $region12
      $region11: #{tpu_custom_call.1} parent=5 // pred_region
        %s187 = ssub.s32 %s14, 1
        // Predicated region
        $region13: #{tpu_custom_call.1} parent=11 // pred_check
          %p188 = pneg %p103
        $region14: #{tpu_custom_call.1} parent=11 // pred_check_branch
          %190 = sbr.rel (%p188) target = $region16
        $region15: #{tpu_custom_call.1} parent=11 // pred_region
          _
        $region16: #{tpu_custom_call.1} parent=11 // pred_fallthru
          _
        // Predicated region
        $region17: #{tpu_custom_call.1} parent=11 // pred_check
          %p191 = pneg %p124
        $region18: #{tpu_custom_call.1} parent=11 // pred_check_branch
          %193 = sbr.rel (%p191) target = $region20
        $region19: #{tpu_custom_call.1} parent=11 // pred_region
          _
        $region20: #{tpu_custom_call.1} parent=11 // pred_fallthru
          _
        // Predicated region
        $region21: #{tpu_custom_call.1} parent=11 // pred_check
          %p194 = pneg %p145
        $region22: #{tpu_custom_call.1} parent=11 // pred_check_branch
          %196 = sbr.rel (%p194) target = $region24
        $region23: #{tpu_custom_call.1} parent=11 // pred_region
          _
        $region24: #{tpu_custom_call.1} parent=11 // pred_fallthru
          _
      $region12: #{tpu_custom_call.1} parent=5 // pred_fallthru
        _
      %p197 = scmp.lt.s32.totalorder %s14, 2
      // Predicated region
      $region25: #{tpu_custom_call.1} parent=5 // pred_check
        %p198 = pneg %p197
      $region26: #{tpu_custom_call.1} parent=5 // pred_check_branch
        %200 = sbr.rel (%p198) target = $region28
      $region27: #{tpu_custom_call.1} parent=5 // pred_region
        // Predicated region
        $region29: #{tpu_custom_call.1} parent=27 // pred_check
          %p201 = pneg %p48
        $region30: #{tpu_custom_call.1} parent=27 // pred_check_branch
          %203 = sbr.rel (%p201) target = $region32
        $region31: #{tpu_custom_call.1} parent=27 // pred_region
          %s204 = smul.u32 2, %s22
          %p205 = scmp.lt.s32.totalorder %s21, 1
          %s206 = scalar_select %p205, %s21, 1
          %p207 = scmp.lt.s32.totalorder %s204, 1
          %s208 = scalar_select %p207, %s204, 1
          %s209 = smul.addr %s206, 8
          %s210 = sadd.s32 %s208, %s209
          %s211 = smul.addr %s210, 8
          %s212 = scalar_lea.vmem %s0, %s211
          %s213 = smul.u32 2, %s22
        $region32: #{tpu_custom_call.1} parent=27 // pred_fallthru
          _
        // Predicated region
        $region33: #{tpu_custom_call.1} parent=27 // pred_check
          %p214 = pneg %p76
        $region34: #{tpu_custom_call.1} parent=27 // pred_check_branch
          %216 = sbr.rel (%p214) target = $region36
        $region35: #{tpu_custom_call.1} parent=27 // pred_region
          %s217 = smul.u32 2, %s22
          %p218 = scmp.lt.s32.totalorder %s21, 1
          %s219 = scalar_select %p218, %s21, 1
          %p220 = scmp.lt.s32.totalorder %s217, 1
          %s221 = scalar_select %p220, %s217, 1
          %s222 = smul.addr %s219, 2
          %s223 = sadd.s32 %s221, %s222
          %s224 = smul.addr %s223, 4
          %s225 = scalar_lea.vmem %s1, %s224
          %s226 = smul.u32 2, %s22
        $region36: #{tpu_custom_call.1} parent=27 // pred_fallthru
          _
      $region28: #{tpu_custom_call.1} parent=5 // pred_fallthru
        _
      %p227 = scmp.le.s32.totalorder 1, %s14
      %p228 = scmp.lt.s32.totalorder %s14, 3
      %p229 = pnand %p227, %p228
      %p230 = pneg %p229
      // Predicated region
      $region37: #{tpu_custom_call.1} parent=5 // pred_check
        _
      $region38: #{tpu_custom_call.1} parent=5 // pred_check_branch
        %232 = sbr.rel (%p229) target = $region40
      $region39: #{tpu_custom_call.1} parent=5 // pred_region
        %s233 = ssub.s32 %s14, 1
        %s234 = smul.u32 2, %s24
        %p235 = scmp.lt.s32.totalorder %s23, 1
        %s236 = scalar_select %p235, %s23, 1
        %p237 = scmp.lt.s32.totalorder %s234, 1
        %s238 = scalar_select %p237, %s234, 1
        %s239 = smul.addr %s236, 8
        %s240 = sadd.s32 %s238, %s239
        %s241 = smul.addr %s240, 8
        %s242 = scalar_lea.vmem %s0, %s241
        %p243 = pneg %p54
        %p244 = pneg %p51
        %s245 = smul.u32 2, %s24
        %p246 = scmp.lt.s32.totalorder %s23, 1
        %s247 = scalar_select %p246, %s23, 1
        %p248 = scmp.lt.s32.totalorder %s245, 1
        %s249 = scalar_select %p248, %s245, 1
        %s250 = smul.addr %s247, 2
        %s251 = sadd.s32 %s249, %s250
        %s252 = smul.addr %s251, 4
        %s253 = scalar_lea.vmem %s1, %s252
        %p254 = pneg %p82
        %p255 = pneg %p79
        %p256 = pneg %p103
        %p257 = pneg %p100
        %p258 = pneg %p124
        %p259 = pneg %p121
        %p260 = pneg %p145
        %p261 = pneg %p142
        %p262 = pneg %p173
        %p263 = pneg %p170
        %s264 = sand.u32 %s160, 1
        %s265 = scalar_lea.sflag [#allocation3], %s264
        %s266 = sand.u32 %s160, 1
        %s267 = smul.addr %s266, 64
        %s268 = scalar_lea.vmem [#allocation2], %s267
        %s269 = smul.u32 2, %s24
        %p270 = scmp.lt.s32.totalorder %s23, 1
        %s271 = scalar_select %p270, %s23, 1
        %p272 = scmp.lt.s32.totalorder %s269, 1
        %s273 = scalar_select %p272, %s269, 1
        %s274 = smul.addr %s271, 8
        %s275 = sadd.s32 %s273, %s274
        %s276 = smul.addr %s275, 8
        %s277 = scalar_lea.vmem %s0, %s276
        %s278 = smul.u32 2, %s24
        %s279 = smul.u32 2, %s24
        %p280 = scmp.lt.s32.totalorder %s23, 1
        %s281 = scalar_select %p280, %s23, 1
        %p282 = scmp.lt.s32.totalorder %s279, 1
        %s283 = scalar_select %p282, %s279, 1
        %s284 = smul.addr %s281, 2
        %s285 = sadd.s32 %s283, %s284
        %s286 = smul.addr %s285, 4
        %s287 = scalar_lea.vmem %s1, %s286
        %s288 = smul.u32 2, %s24
        %s289 = smul.u32 2, %s24
        %v290 = vld [vmem:[%s2] sm:$0xff]
        %v291 = vld [vmem:[%s2 + $0x8] sm:$0xff]
        %v292 = vld [vmem:[%s2 + $0x10] sm:$0xff]
        %v293 = vld [vmem:[%s2 + $0x18] sm:$0xff]
        %v294 = vld [vmem:[%s2 + $0x20] sm:$0xff]
        %v295 = vld [vmem:[%s2 + $0x28] sm:$0xff]
        %v296 = vld [vmem:[%s2 + $0x30] sm:$0xff]
        %v297 = vld [vmem:[%s2 + $0x38] sm:$0xff]
        %v298 = vld [vmem:[%s2 + $0x40] sm:$0xff]
        %v299 = vld [vmem:[%s2 + $0x48] sm:$0xff]
        %v300 = vld [vmem:[%s2 + $0x50] sm:$0xff]
        %v301 = vld [vmem:[%s2 + $0x58] sm:$0xff]
        %v302 = vld [vmem:[%s2 + $0x60] sm:$0xff]
        %v303 = vld [vmem:[%s2 + $0x68] sm:$0xff]
        %v304 = vld [vmem:[%s2 + $0x70] sm:$0xff]
        %v305 = vld [vmem:[%s2 + $0x78] sm:$0xff]
        %v306 = vld [vmem:[%s277] sm:$0xff]
        %v307 = vld [vmem:[%s277 + $0x8] sm:$0xff]
        %v308 = vld [vmem:[%s277 + $0x10] sm:$0xff]
        %v309 = vld [vmem:[%s277 + $0x18] sm:$0xff]
        %v310 = vld [vmem:[%s277 + $0x20] sm:$0xff]
        %v311 = vld [vmem:[%s277 + $0x28] sm:$0xff]
        %v312 = vld [vmem:[%s277 + $0x30] sm:$0xff]
        %v313 = vld [vmem:[%s277 + $0x38] sm:$0xff]
        %v314 = vld [vmem:[%s3] sm:$0xff]
        %v315 = vld [vmem:[%s3 + $0x8] sm:$0xff]
        %v316 = vld [vmem:[%s3 + $0x10] sm:$0xff]
        %v317 = vld [vmem:[%s3 + $0x18] sm:$0xff]
        %v318 = vld [vmem:[%s3 + $0x20] sm:$0xff]
        %v319 = vld [vmem:[%s3 + $0x28] sm:$0xff]
        %v320 = vld [vmem:[%s3 + $0x30] sm:$0xff]
        %v321 = vld [vmem:[%s3 + $0x38] sm:$0xff]
        %v322 = vld [vmem:[%s3 + $0x40] sm:$0xff]
        %v323 = vld [vmem:[%s3 + $0x48] sm:$0xff]
        %v324 = vld [vmem:[%s3 + $0x50] sm:$0xff]
        %v325 = vld [vmem:[%s3 + $0x58] sm:$0xff]
        %v326 = vld [vmem:[%s3 + $0x60] sm:$0xff]
        %v327 = vld [vmem:[%s3 + $0x68] sm:$0xff]
        %v328 = vld [vmem:[%s3 + $0x70] sm:$0xff]
        %v329 = vld [vmem:[%s3 + $0x78] sm:$0xff]
        %v330 = vld [vmem:[%s287] sm:$0xff]
        %v332 = vcombine.high %v330, %v330
        %vm333 = vcmask 31744
        %v335 = vsel %vm333, %v314, 0
        %v338 = vsel %vm333, %v315, 0
        %v341 = vsel %vm333, %v316, 0
        %v344 = vsel %vm333, %v317, 0
        %v347 = vsel %vm333, %v318, 0
        %v350 = vsel %vm333, %v319, 0
        %v353 = vsel %vm333, %v320, 0
        %v356 = vsel %vm333, %v321, 0
        %v359 = vsel %vm333, %v322, 0
        %v362 = vsel %vm333, %v323, 0
        %v365 = vsel %vm333, %v324, 0
        %v368 = vsel %vm333, %v325, 0
        %v371 = vsel %vm333, %v326, 0
        %v374 = vsel %vm333, %v327, 0
        %v377 = vsel %vm333, %v328, 0
        %v380 = vsel %vm333, %v329, 0
        %vm382 = vcmask 1043456
        %v383 = vsel %vm382, %v330, 0
        %v385 = vsel %vm382, %v332, 0
        %387 = vmatprep.subr.mxu0 0.0
        %388 = vmatpush1.msra.mxu0 0.0
        %389 = vmatprep.subr.mxu0 0.0
        %390 = vmatpush1.msra.mxu0 0.0
        %391 = vmatprep.subr.mxu0 0.0
        %392 = vmatpush1.msra.mxu0 0.0
        %393 = vmatprep.subr.mxu0 0.0
        %394 = vmatpush1.msra.mxu0 0.0
        %395 = vmatprep.subr.mxu0 0.0
        %396 = vmatpush1.msra.mxu0 0.0
        %397 = vmatprep.subr.mxu0 0.0
        %398 = vmatpush1.msra.mxu0 0.0
        %399 = vmatprep.subr.mxu0 0.0
        %400 = vmatpush1.msra.mxu0 0.0
        %401 = vmatprep.subr.mxu0 0.0
        %402 = vmatpush1.msra.mxu0 0.0
        %403 = vmatprep.subr.mxu0 0.0
        %404 = vmatpush1.msra.mxu0 0.0
        %405 = vmatprep.subr.mxu0 0.0
        %406 = vmatpush1.msra.mxu0 0.0
        %407 = vmatprep.subr.mxu0 0.0
        %408 = vmatpush1.msra.mxu0 0.0
        %409 = vmatprep.subr.mxu0 0.0
        %410 = vmatpush1.msra.mxu0 0.0
        %411 = vmatprep.subr.mxu0 0.0
        %412 = vmatpush1.msra.mxu0 0.0
        %413 = vmatprep.subr.mxu0 0.0
        %414 = vmatpush1.msra.mxu0 0.0
        %415 = vmatprep.subr.mxu0 0.0
        %416 = vmatpush1.msra.mxu0 0.0
        %417 = vmatprep.subr.mxu0 %v385
        %418 = vmatpush1.msra.mxu0 %v383
        %419 = vmatprep.subr.mxu0 0.0
        %420 = vmatpush2.msra.mxu0 0.0
        %421 = vmatprep.subr.mxu0 0.0
        %422 = vmatpush2.msra.mxu0 0.0
        %423 = vmatprep.subr.mxu0 0.0
        %424 = vmatpush2.msra.mxu0 0.0
        %425 = vmatprep.subr.mxu0 0.0
        %426 = vmatpush2.msra.mxu0 0.0
        %427 = vmatprep.subr.mxu0 0.0
        %428 = vmatpush2.msra.mxu0 0.0
        %429 = vmatprep.subr.mxu0 0.0
        %430 = vmatpush2.msra.mxu0 0.0
        %431 = vmatprep.subr.mxu0 0.0
        %432 = vmatpush2.msra.mxu0 0.0
        %433 = vmatprep.subr.mxu0 0.0
        %434 = vmatpush2.msra.mxu0 0.0
        %435 = vmatprep.subr.mxu0 0.0
        %436 = vmatpush2.msra.mxu0 0.0
        %437 = vmatprep.subr.mxu0 0.0
        %438 = vmatpush2.msra.mxu0 0.0
        %439 = vmatprep.subr.mxu0 0.0
        %440 = vmatpush2.msra.mxu0 0.0
        %441 = vmatprep.subr.mxu0 0.0
        %442 = vmatpush2.msra.mxu0 0.0
        %443 = vmatprep.subr.mxu0 0.0
        %444 = vmatpush2.msra.mxu0 0.0
        %445 = vmatprep.subr.mxu0 0.0
        %446 = vmatpush2.msra.mxu0 0.0
        %447 = vmatprep.subr.mxu0 0.0
        %448 = vmatpush2.msra.mxu0 0.0
        %449 = vmatprep.subr.mxu0 0.0
        %450 = vmatpush2.msra.mxu0 0.0
        %451 = vmatprep.mubr.f32.mxu0 0.0
        %452 = vmatmul.mubr.f32.gmra.mxu0 %v335
        %v453 = vpop.f32.mrf.mxu0
        %v454 = vadd.f32 0.0, %v453
        %v455 = vpop.f32.mrf.mxu0
        %v456 = vadd.f32 0.0, %v455
        %457 = vmatprep.mubr.f32.mxu0 0.0
        %458 = vmatmul.mubr.f32.gmra.mxu0 %v338
        %v459 = vpop.f32.mrf.mxu0
        %v460 = vadd.f32 0.0, %v459
        %v461 = vpop.f32.mrf.mxu0
        %v462 = vadd.f32 0.0, %v461
        %463 = vmatprep.mubr.f32.mxu0 0.0
        %464 = vmatmul.mubr.f32.gmra.mxu0 %v341
        %v465 = vpop.f32.mrf.mxu0
        %v466 = vadd.f32 0.0, %v465
        %v467 = vpop.f32.mrf.mxu0
        %v468 = vadd.f32 0.0, %v467
        %469 = vmatprep.mubr.f32.mxu0 0.0
        %470 = vmatmul.mubr.f32.gmra.mxu0 %v344
        %v471 = vpop.f32.mrf.mxu0
        %v472 = vadd.f32 0.0, %v471
        %v473 = vpop.f32.mrf.mxu0
        %v474 = vadd.f32 0.0, %v473
        %475 = vmatprep.mubr.f32.mxu0 0.0
        %476 = vmatmul.mubr.f32.gmra.mxu0 %v347
        %v477 = vpop.f32.mrf.mxu0
        %v478 = vadd.f32 0.0, %v477
        %v479 = vpop.f32.mrf.mxu0
        %v480 = vadd.f32 0.0, %v479
        %481 = vmatprep.mubr.f32.mxu0 0.0
        %482 = vmatmul.mubr.f32.gmra.mxu0 %v350
        %v483 = vpop.f32.mrf.mxu0
        %v484 = vadd.f32 0.0, %v483
        %v485 = vpop.f32.mrf.mxu0
        %v486 = vadd.f32 0.0, %v485
        %487 = vmatprep.mubr.f32.mxu0 0.0
        %488 = vmatmul.mubr.f32.gmra.mxu0 %v353
        %v489 = vpop.f32.mrf.mxu0
        %v490 = vadd.f32 0.0, %v489
        %v491 = vpop.f32.mrf.mxu0
        %v492 = vadd.f32 0.0, %v491
        %493 = vmatprep.mubr.f32.mxu0 0.0
        %494 = vmatmul.mubr.f32.gmra.mxu0 %v356
        %v495 = vpop.f32.mrf.mxu0
        %v496 = vadd.f32 0.0, %v495
        %v497 = vpop.f32.mrf.mxu0
        %v498 = vadd.f32 0.0, %v497
        %499 = vmatprep.mubr.f32.mxu0 0.0
        %500 = vmatmul.mubr.f32.gmra.mxu0 %v359
        %v501 = vpop.f32.mrf.mxu0
        %v502 = vadd.f32 0.0, %v501
        %v503 = vpop.f32.mrf.mxu0
        %v504 = vadd.f32 0.0, %v503
        %505 = vmatprep.mubr.f32.mxu0 0.0
        %506 = vmatmul.mubr.f32.gmra.mxu0 %v362
        %v507 = vpop.f32.mrf.mxu0
        %v508 = vadd.f32 0.0, %v507
        %v509 = vpop.f32.mrf.mxu0
        %v510 = vadd.f32 0.0, %v509
        %511 = vmatprep.mubr.f32.mxu0 0.0
        %512 = vmatmul.mubr.f32.gmra.mxu0 %v365
        %v513 = vpop.f32.mrf.mxu0
        %v514 = vadd.f32 0.0, %v513
        %v515 = vpop.f32.mrf.mxu0
        %v516 = vadd.f32 0.0, %v515
        %517 = vmatprep.mubr.f32.mxu0 0.0
        %518 = vmatmul.mubr.f32.gmra.mxu0 %v368
        %v519 = vpop.f32.mrf.mxu0
        %v520 = vadd.f32 0.0, %v519
        %v521 = vpop.f32.mrf.mxu0
        %v522 = vadd.f32 0.0, %v521
        %523 = vmatprep.mubr.f32.mxu0 0.0
        %524 = vmatmul.mubr.f32.gmra.mxu0 %v371
        %v525 = vpop.f32.mrf.mxu0
        %v526 = vadd.f32 0.0, %v525
        %v527 = vpop.f32.mrf.mxu0
        %v528 = vadd.f32 0.0, %v527
        %529 = vmatprep.mubr.f32.mxu0 0.0
        %530 = vmatmul.mubr.f32.gmra.mxu0 %v374
        %v531 = vpop.f32.mrf.mxu0
        %v532 = vadd.f32 0.0, %v531
        %v533 = vpop.f32.mrf.mxu0
        %v534 = vadd.f32 0.0, %v533
        %535 = vmatprep.mubr.f32.mxu0 0.0
        %536 = vmatmul.mubr.f32.gmra.mxu0 %v377
        %v537 = vpop.f32.mrf.mxu0
        %v538 = vadd.f32 0.0, %v537
        %v539 = vpop.f32.mrf.mxu0
        %v540 = vadd.f32 0.0, %v539
        %541 = vmatprep.mubr.f32.mxu0 0.0
        %542 = vmatmul.mubr.f32.gmra.mxu0 %v380
        %v543 = vpop.f32.mrf.mxu0
        %v544 = vadd.f32 0.0, %v543
        %v545 = vpop.f32.mrf.mxu0
        %v546 = vadd.f32 0.0, %v545
        %547 = vdwg.mxu0
        %vm548 = vcmask 261120
        %v550 = vsel %vm548, %v290, 0
        %v553 = vsel %vm548, %v291, 0
        %v556 = vsel %vm548, %v292, 0
        %v559 = vsel %vm548, %v293, 0
        %v562 = vsel %vm548, %v294, 0
        %v565 = vsel %vm548, %v295, 0
        %v568 = vsel %vm548, %v296, 0
        %v571 = vsel %vm548, %v297, 0
        %v574 = vsel %vm548, %v298, 0
        %v577 = vsel %vm548, %v299, 0
        %v580 = vsel %vm548, %v300, 0
        %v583 = vsel %vm548, %v301, 0
        %v586 = vsel %vm548, %v302, 0
        %v589 = vsel %vm548, %v303, 0
        %v592 = vsel %vm548, %v304, 0
        %v595 = vsel %vm548, %v305, 0
        %597 = vmatprep.subr.mxu0 0.0
        %598 = vmatpush1.msra.mxu0 0.0
        %599 = vmatprep.subr.mxu0 0.0
        %600 = vmatpush1.msra.mxu0 0.0
        %601 = vmatprep.subr.mxu0 0.0
        %602 = vmatpush1.msra.mxu0 0.0
        %603 = vmatprep.subr.mxu0 0.0
        %604 = vmatpush1.msra.mxu0 0.0
        %605 = vmatprep.subr.mxu0 0.0
        %606 = vmatpush1.msra.mxu0 0.0
        %607 = vmatprep.subr.mxu0 0.0
        %608 = vmatpush1.msra.mxu0 0.0
        %609 = vmatprep.subr.mxu0 0.0
        %610 = vmatpush1.msra.mxu0 0.0
        %611 = vmatprep.subr.mxu0 0.0
        %612 = vmatpush1.msra.mxu0 0.0
        %613 = vmatprep.subr.mxu0 0.0
        %614 = vmatpush1.msra.mxu0 0.0
        %615 = vmatprep.subr.mxu0 0.0
        %616 = vmatpush1.msra.mxu0 0.0
        %617 = vmatprep.subr.mxu0 0.0
        %618 = vmatpush1.msra.mxu0 0.0
        %619 = vmatprep.subr.mxu0 0.0
        %620 = vmatpush1.msra.mxu0 0.0
        %621 = vmatprep.subr.mxu0 %v313
        %622 = vmatpush1.msra.mxu0 %v312
        %623 = vmatprep.subr.mxu0 %v311
        %624 = vmatpush1.msra.mxu0 %v310
        %625 = vmatprep.subr.mxu0 %v309
        %626 = vmatpush1.msra.mxu0 %v308
        %627 = vmatprep.subr.mxu0 %v307
        %628 = vmatpush1.msra.mxu0 %v306
        %629 = vmatprep.subr.mxu0 0.0
        %630 = vmatpush2.msra.mxu0 0.0
        %631 = vmatprep.subr.mxu0 0.0
        %632 = vmatpush2.msra.mxu0 0.0
        %633 = vmatprep.subr.mxu0 0.0
        %634 = vmatpush2.msra.mxu0 0.0
        %635 = vmatprep.subr.mxu0 0.0
        %636 = vmatpush2.msra.mxu0 0.0
        %637 = vmatprep.subr.mxu0 0.0
        %638 = vmatpush2.msra.mxu0 0.0
        %639 = vmatprep.subr.mxu0 0.0
        %640 = vmatpush2.msra.mxu0 0.0
        %641 = vmatprep.subr.mxu0 0.0
        %642 = vmatpush2.msra.mxu0 0.0
        %643 = vmatprep.subr.mxu0 0.0
        %644 = vmatpush2.msra.mxu0 0.0
        %645 = vmatprep.subr.mxu0 0.0
        %646 = vmatpush2.msra.mxu0 0.0
        %647 = vmatprep.subr.mxu0 0.0
        %648 = vmatpush2.msra.mxu0 0.0
        %649 = vmatprep.subr.mxu0 0.0
        %650 = vmatpush2.msra.mxu0 0.0
        %651 = vmatprep.subr.mxu0 0.0
        %652 = vmatpush2.msra.mxu0 0.0
        %653 = vmatprep.subr.mxu0 0.0
        %654 = vmatpush2.msra.mxu0 0.0
        %655 = vmatprep.subr.mxu0 0.0
        %656 = vmatpush2.msra.mxu0 0.0
        %657 = vmatprep.subr.mxu0 0.0
        %658 = vmatpush2.msra.mxu0 0.0
        %659 = vmatprep.subr.mxu0 0.0
        %660 = vmatpush2.msra.mxu0 0.0
        %661 = vmatprep.mubr.f32.mxu0 0.0
        %662 = vmatmul.mubr.f32.gmra.mxu0 %v550
        %v663 = vpop.f32.mrf.mxu0
        %v664 = vadd.f32 %v454, %v663
        %v665 = vpop.f32.mrf.mxu0
        %v666 = vadd.f32 %v456, %v665
        %667 = vmatprep.mubr.f32.mxu0 0.0
        %668 = vmatmul.mubr.f32.gmra.mxu0 %v553
        %v669 = vpop.f32.mrf.mxu0
        %v670 = vadd.f32 %v460, %v669
        %v671 = vpop.f32.mrf.mxu0
        %v672 = vadd.f32 %v462, %v671
        %673 = vmatprep.mubr.f32.mxu0 0.0
        %674 = vmatmul.mubr.f32.gmra.mxu0 %v556
        %v675 = vpop.f32.mrf.mxu0
        %v676 = vadd.f32 %v466, %v675
        %v677 = vpop.f32.mrf.mxu0
        %v678 = vadd.f32 %v468, %v677
        %679 = vmatprep.mubr.f32.mxu0 0.0
        %680 = vmatmul.mubr.f32.gmra.mxu0 %v559
        %v681 = vpop.f32.mrf.mxu0
        %v682 = vadd.f32 %v472, %v681
        %v683 = vpop.f32.mrf.mxu0
        %v684 = vadd.f32 %v474, %v683
        %685 = vmatprep.mubr.f32.mxu0 0.0
        %686 = vmatmul.mubr.f32.gmra.mxu0 %v562
        %v687 = vpop.f32.mrf.mxu0
        %v688 = vadd.f32 %v478, %v687
        %v689 = vpop.f32.mrf.mxu0
        %v690 = vadd.f32 %v480, %v689
        %691 = vmatprep.mubr.f32.mxu0 0.0
        %692 = vmatmul.mubr.f32.gmra.mxu0 %v565
        %v693 = vpop.f32.mrf.mxu0
        %v694 = vadd.f32 %v484, %v693
        %v695 = vpop.f32.mrf.mxu0
        %v696 = vadd.f32 %v486, %v695
        %697 = vmatprep.mubr.f32.mxu0 0.0
        %698 = vmatmul.mubr.f32.gmra.mxu0 %v568
        %v699 = vpop.f32.mrf.mxu0
        %v700 = vadd.f32 %v490, %v699
        %v701 = vpop.f32.mrf.mxu0
        %v702 = vadd.f32 %v492, %v701
        %703 = vmatprep.mubr.f32.mxu0 0.0
        %704 = vmatmul.mubr.f32.gmra.mxu0 %v571
        %v705 = vpop.f32.mrf.mxu0
        %v706 = vadd.f32 %v496, %v705
        %v707 = vpop.f32.mrf.mxu0
        %v708 = vadd.f32 %v498, %v707
        %709 = vmatprep.mubr.f32.mxu0 0.0
        %710 = vmatmul.mubr.f32.gmra.mxu0 %v574
        %v711 = vpop.f32.mrf.mxu0
        %v712 = vadd.f32 %v502, %v711
        %v713 = vpop.f32.mrf.mxu0
        %v714 = vadd.f32 %v504, %v713
        %715 = vmatprep.mubr.f32.mxu0 0.0
        %716 = vmatmul.mubr.f32.gmra.mxu0 %v577
        %v717 = vpop.f32.mrf.mxu0
        %v718 = vadd.f32 %v508, %v717
        %v719 = vpop.f32.mrf.mxu0
        %v720 = vadd.f32 %v510, %v719
        %721 = vmatprep.mubr.f32.mxu0 0.0
        %722 = vmatmul.mubr.f32.gmra.mxu0 %v580
        %v723 = vpop.f32.mrf.mxu0
        %v724 = vadd.f32 %v514, %v723
        %v725 = vpop.f32.mrf.mxu0
        %v726 = vadd.f32 %v516, %v725
        %727 = vmatprep.mubr.f32.mxu0 0.0
        %728 = vmatmul.mubr.f32.gmra.mxu0 %v583
        %v729 = vpop.f32.mrf.mxu0
        %v730 = vadd.f32 %v520, %v729
        %v731 = vpop.f32.mrf.mxu0
        %v732 = vadd.f32 %v522, %v731
        %733 = vmatprep.mubr.f32.mxu0 0.0
        %734 = vmatmul.mubr.f32.gmra.mxu0 %v586
        %v735 = vpop.f32.mrf.mxu0
        %v736 = vadd.f32 %v526, %v735
        %v737 = vpop.f32.mrf.mxu0
        %v738 = vadd.f32 %v528, %v737
        %739 = vmatprep.mubr.f32.mxu0 0.0
        %740 = vmatmul.mubr.f32.gmra.mxu0 %v589
        %v741 = vpop.f32.mrf.mxu0
        %v742 = vadd.f32 %v532, %v741
        %v743 = vpop.f32.mrf.mxu0
        %v744 = vadd.f32 %v534, %v743
        %745 = vmatprep.mubr.f32.mxu0 0.0
        %746 = vmatmul.mubr.f32.gmra.mxu0 %v592
        %v747 = vpop.f32.mrf.mxu0
        %v748 = vadd.f32 %v538, %v747
        %v749 = vpop.f32.mrf.mxu0
        %v750 = vadd.f32 %v540, %v749
        %751 = vmatprep.mubr.f32.mxu0 0.0
        %752 = vmatmul.mubr.f32.gmra.mxu0 %v595
        %v753 = vpop.f32.mrf.mxu0
        %v754 = vadd.f32 %v544, %v753
        %v755 = vpop.f32.mrf.mxu0
        %v756 = vadd.f32 %v546, %v755
        %757 = vdwg.mxu0
        %v758 = vld [vmem:[%s4] sm:$0xff]
        %v759 = vld [vmem:[%s4 + $0x8] sm:$0xff]
        %v760 = vld [vmem:[%s4 + $0x10] sm:$0xff]
        %v761 = vld [vmem:[%s4 + $0x18] sm:$0xff]
        %v762 = vld [vmem:[%s4 + $0x20] sm:$0xff]
        %v763 = vld [vmem:[%s4 + $0x28] sm:$0xff]
        %v764 = vld [vmem:[%s4 + $0x30] sm:$0xff]
        %v765 = vld [vmem:[%s4 + $0x38] sm:$0xff]
        %v766 = vld [vmem:[%s4 + $0x40] sm:$0xff]
        %v767 = vld [vmem:[%s4 + $0x48] sm:$0xff]
        %v768 = vld [vmem:[%s4 + $0x50] sm:$0xff]
        %v769 = vld [vmem:[%s4 + $0x58] sm:$0xff]
        %v770 = vld [vmem:[%s4 + $0x60] sm:$0xff]
        %v771 = vld [vmem:[%s4 + $0x68] sm:$0xff]
        %v772 = vld [vmem:[%s4 + $0x70] sm:$0xff]
        %v773 = vld [vmem:[%s4 + $0x78] sm:$0xff]
        %775 = vset.pattern.permute.xlu0 0
        %776 = vperm.xlu0 %775, %v758
        %v777 = vpop.permute.xlu0 %776
        %780 = vset.pattern.permute.xlu0 0
        %781 = vperm.xlu0 %780, %v759
        %v782 = vpop.permute.xlu0 %781
        %785 = vset.pattern.permute.xlu0 0
        %786 = vperm.xlu0 %785, %v760
        %v787 = vpop.permute.xlu0 %786
        %790 = vset.pattern.permute.xlu0 0
        %791 = vperm.xlu0 %790, %v761
        %v792 = vpop.permute.xlu0 %791
        %795 = vset.pattern.permute.xlu0 0
        %796 = vperm.xlu0 %795, %v762
        %v797 = vpop.permute.xlu0 %796
        %800 = vset.pattern.permute.xlu0 0
        %801 = vperm.xlu0 %800, %v763
        %v802 = vpop.permute.xlu0 %801
        %805 = vset.pattern.permute.xlu0 0
        %806 = vperm.xlu0 %805, %v764
        %v807 = vpop.permute.xlu0 %806
        %810 = vset.pattern.permute.xlu0 0
        %811 = vperm.xlu0 %810, %v765
        %v812 = vpop.permute.xlu0 %811
        %815 = vset.pattern.permute.xlu0 0
        %816 = vperm.xlu0 %815, %v766
        %v817 = vpop.permute.xlu0 %816
        %820 = vset.pattern.permute.xlu0 0
        %821 = vperm.xlu0 %820, %v767
        %v822 = vpop.permute.xlu0 %821
        %825 = vset.pattern.permute.xlu0 0
        %826 = vperm.xlu0 %825, %v768
        %v827 = vpop.permute.xlu0 %826
        %830 = vset.pattern.permute.xlu0 0
        %831 = vperm.xlu0 %830, %v769
        %v832 = vpop.permute.xlu0 %831
        %835 = vset.pattern.permute.xlu0 0
        %836 = vperm.xlu0 %835, %v770
        %v837 = vpop.permute.xlu0 %836
        %840 = vset.pattern.permute.xlu0 0
        %841 = vperm.xlu0 %840, %v771
        %v842 = vpop.permute.xlu0 %841
        %845 = vset.pattern.permute.xlu0 0
        %846 = vperm.xlu0 %845, %v772
        %v847 = vpop.permute.xlu0 %846
        %850 = vset.pattern.permute.xlu0 0
        %851 = vperm.xlu0 %850, %v773
        %v852 = vpop.permute.xlu0 %851
        %v854 = vadd.f32 %v664, %v777
        %v855 = vadd.f32 %v666, %v777
        %v856 = vadd.f32 %v670, %v782
        %v857 = vadd.f32 %v672, %v782
        %v858 = vadd.f32 %v676, %v787
        %v859 = vadd.f32 %v678, %v787
        %v860 = vadd.f32 %v682, %v792
        %v861 = vadd.f32 %v684, %v792
        %v862 = vadd.f32 %v688, %v797
        %v863 = vadd.f32 %v690, %v797
        %v864 = vadd.f32 %v694, %v802
        %v865 = vadd.f32 %v696, %v802
        %v866 = vadd.f32 %v700, %v807
        %v867 = vadd.f32 %v702, %v807
        %v868 = vadd.f32 %v706, %v812
        %v869 = vadd.f32 %v708, %v812
        %v870 = vadd.f32 %v712, %v817
        %v871 = vadd.f32 %v714, %v817
        %v872 = vadd.f32 %v718, %v822
        %v873 = vadd.f32 %v720, %v822
        %v874 = vadd.f32 %v724, %v827
        %v875 = vadd.f32 %v726, %v827
        %v876 = vadd.f32 %v730, %v832
        %v877 = vadd.f32 %v732, %v832
        %v878 = vadd.f32 %v736, %v837
        %v879 = vadd.f32 %v738, %v837
        %v880 = vadd.f32 %v742, %v842
        %v881 = vadd.f32 %v744, %v842
        %v882 = vadd.f32 %v748, %v847
        %v883 = vadd.f32 %v750, %v847
        %v884 = vadd.f32 %v754, %v852
        %v885 = vadd.f32 %v756, %v852
        %v886 = vxor.u32 %v854, 2147483648
        %v887 = vxor.u32 %v855, 2147483648
        %v888 = vxor.u32 %v856, 2147483648
        %v889 = vxor.u32 %v857, 2147483648
        %v890 = vxor.u32 %v858, 2147483648
        %v891 = vxor.u32 %v859, 2147483648
        %v892 = vxor.u32 %v860, 2147483648
        %v893 = vxor.u32 %v861, 2147483648
        %v894 = vmul.f32 %v886, 1.442695
        %v895 = vpow.pop %v894
        %v896 = vmul.f32 %v887, 1.442695
        %v897 = vpow.pop %v896
        %v898 = vmul.f32 %v888, 1.442695
        %v899 = vpow.pop %v898
        %v900 = vmul.f32 %v889, 1.442695
        %v901 = vpow.pop %v900
        %v902 = vmul.f32 %v890, 1.442695
        %v903 = vpow.pop %v902
        %v904 = vmul.f32 %v891, 1.442695
        %v905 = vpow.pop %v904
        %v906 = vmul.f32 %v892, 1.442695
        %v907 = vpow.pop %v906
        %v908 = vmul.f32 %v893, 1.442695
        %v909 = vpow.pop %v908
        %v910 = vadd.f32 %v895, 1.0
        %v911 = vadd.f32 %v897, 1.0
        %v912 = vadd.f32 %v899, 1.0
        %v913 = vadd.f32 %v901, 1.0
        %v914 = vadd.f32 %v903, 1.0
        %v915 = vadd.f32 %v905, 1.0
        %v916 = vadd.f32 %v907, 1.0
        %v917 = vadd.f32 %v909, 1.0
        %v918 = vrcp.pop %v910
        %v919 = vmul.f32 1.0, %v918
        %v920 = vrcp.pop %v911
        %v921 = vmul.f32 1.0, %v920
        %v922 = vrcp.pop %v912
        %v923 = vmul.f32 1.0, %v922
        %v924 = vrcp.pop %v913
        %v925 = vmul.f32 1.0, %v924
        %v926 = vrcp.pop %v914
        %v927 = vmul.f32 1.0, %v926
        %v928 = vrcp.pop %v915
        %v929 = vmul.f32 1.0, %v928
        %v930 = vrcp.pop %v916
        %v931 = vmul.f32 1.0, %v930
        %v932 = vrcp.pop %v917
        %v933 = vmul.f32 1.0, %v932
        %v934 = vxor.u32 %v862, 2147483648
        %v935 = vxor.u32 %v863, 2147483648
        %v936 = vxor.u32 %v864, 2147483648
        %v937 = vxor.u32 %v865, 2147483648
        %v938 = vxor.u32 %v866, 2147483648
        %v939 = vxor.u32 %v867, 2147483648
        %v940 = vxor.u32 %v868, 2147483648
        %v941 = vxor.u32 %v869, 2147483648
        %v942 = vmul.f32 %v934, 1.442695
        %v943 = vpow.pop %v942
        %v944 = vmul.f32 %v935, 1.442695
        %v945 = vpow.pop %v944
        %v946 = vmul.f32 %v936, 1.442695
        %v947 = vpow.pop %v946
        %v948 = vmul.f32 %v937, 1.442695
        %v949 = vpow.pop %v948
        %v950 = vmul.f32 %v938, 1.442695
        %v951 = vpow.pop %v950
        %v952 = vmul.f32 %v939, 1.442695
        %v953 = vpow.pop %v952
        %v954 = vmul.f32 %v940, 1.442695
        %v955 = vpow.pop %v954
        %v956 = vmul.f32 %v941, 1.442695
        %v957 = vpow.pop %v956
        %v958 = vadd.f32 %v943, 1.0
        %v959 = vadd.f32 %v945, 1.0
        %v960 = vadd.f32 %v947, 1.0
        %v961 = vadd.f32 %v949, 1.0
        %v962 = vadd.f32 %v951, 1.0
        %v963 = vadd.f32 %v953, 1.0
        %v964 = vadd.f32 %v955, 1.0
        %v965 = vadd.f32 %v957, 1.0
        %v966 = vrcp.pop %v958
        %v967 = vmul.f32 1.0, %v966
        %v968 = vrcp.pop %v959
        %v969 = vmul.f32 1.0, %v968
        %v970 = vrcp.pop %v960
        %v971 = vmul.f32 1.0, %v970
        %v972 = vrcp.pop %v961
        %v973 = vmul.f32 1.0, %v972
        %v974 = vrcp.pop %v962
        %v975 = vmul.f32 1.0, %v974
        %v976 = vrcp.pop %v963
        %v977 = vmul.f32 1.0, %v976
        %v978 = vrcp.pop %v964
        %v979 = vmul.f32 1.0, %v978
        %v980 = vrcp.pop %v965
        %v981 = vmul.f32 1.0, %v980
        %v982 = vmul.f32 %v919, %v878
        %v983 = vmul.f32 %v921, %v879
        %v984 = vmul.f32 %v923, %v880
        %v985 = vmul.f32 %v925, %v881
        %v986 = vmul.f32 %v927, %v882
        %v987 = vmul.f32 %v929, %v883
        %v988 = vmul.f32 %v931, %v884
        %v989 = vmul.f32 %v933, %v885
        %v990 = vadd.f32 %v870, %v982
        %v991 = vadd.f32 %v871, %v983
        %v992 = vadd.f32 %v872, %v984
        %v993 = vadd.f32 %v873, %v985
        %v994 = vadd.f32 %v874, %v986
        %v995 = vadd.f32 %v875, %v987
        %v996 = vadd.f32 %v876, %v988
        %v997 = vadd.f32 %v877, %v989
        %v998 = vtanh.pop %v990
        %v999 = vtanh.pop %v991
        %v1000 = vtanh.pop %v992
        %v1001 = vtanh.pop %v993
        %v1002 = vtanh.pop %v994
        %v1003 = vtanh.pop %v995
        %v1004 = vtanh.pop %v996
        %v1005 = vtanh.pop %v997
        %v1006 = vsub.f32 %v306, %v998
        %v1007 = vsub.f32 %v307, %v999
        %v1008 = vsub.f32 %v308, %v1000
        %v1009 = vsub.f32 %v309, %v1001
        %v1010 = vsub.f32 %v310, %v1002
        %v1011 = vsub.f32 %v311, %v1003
        %v1012 = vsub.f32 %v312, %v1004
        %v1013 = vsub.f32 %v313, %v1005
        %v1014 = vmul.f32 %v967, %v1006
        %v1015 = vmul.f32 %v969, %v1007
        %v1016 = vmul.f32 %v971, %v1008
        %v1017 = vmul.f32 %v973, %v1009
        %v1018 = vmul.f32 %v975, %v1010
        %v1019 = vmul.f32 %v977, %v1011
        %v1020 = vmul.f32 %v979, %v1012
        %v1021 = vmul.f32 %v981, %v1013
        %v1022 = vadd.f32 %v998, %v1014
        %v1023 = vadd.f32 %v999, %v1015
        %v1024 = vadd.f32 %v1000, %v1016
        %v1025 = vadd.f32 %v1001, %v1017
        %v1026 = vadd.f32 %v1002, %v1018
        %v1027 = vadd.f32 %v1003, %v1019
        %v1028 = vadd.f32 %v1004, %v1020
        %v1029 = vadd.f32 %v1005, %v1021
        %1030 = vst [vmem:[%s268] sm:$0xff] %v1022
        %1031 = vst [vmem:[%s268 + $0x8] sm:$0xff] %v1023
        %1032 = vst [vmem:[%s268 + $0x10] sm:$0xff] %v1024
        %1033 = vst [vmem:[%s268 + $0x18] sm:$0xff] %v1025
        %1034 = vst [vmem:[%s268 + $0x20] sm:$0xff] %v1026
        %1035 = vst [vmem:[%s268 + $0x28] sm:$0xff] %v1027
        %1036 = vst [vmem:[%s268 + $0x30] sm:$0xff] %v1028
        %1037 = vst [vmem:[%s268 + $0x38] sm:$0xff] %v1029
        %s1038 = sand.u32 %s160, 1
        %s1039 = scalar_lea.sflag [#allocation3], %s1038
        %s1040 = sand.u32 %s160, 1
        %s1041 = smul.addr %s1040, 64
        %s1042 = scalar_lea.vmem [#allocation2], %s1041
        // Predicated region
        $region41: #{tpu_custom_call.1} parent=39 // pred_check
          %p1043 = pneg %p170
        $region42: #{tpu_custom_call.1} parent=39 // pred_check_branch
          %1045 = sbr.rel (%p1043) target = $region44
        $region43: #{tpu_custom_call.1} parent=39 // pred_region
          %s1046 = smul.u32 2, %s24
          %s1048 = ssub.s32 1024, 1024
          %1049 = vsyncadd %s1039, %s1048
          %s1050 = smul.addr %s23, 8
          %s1051 = sadd.s32 %s1046, %s1050
          %s1052 = smul.addr %s1051, 128
          %s1053 = scalar_lea.hbm %s5, %s1052
          %s1054 = sshll.u32 %s1042, 4
          %s1055 = int_to_ptr.vmem [resolvable:$true] %s1054
          %1060 = dma.vmem_to_hbm [thread:$0]  %s1055, 1024, %s1053, %s1039, 256, 256, 16
        $region44: #{tpu_custom_call.1} parent=39 // pred_fallthru
          _
      $region40: #{tpu_custom_call.1} parent=5 // pred_fallthru
        _
      %p1061 = scmp.le.s32.totalorder 2, %s14
      // Predicated region
      $region45: #{tpu_custom_call.1} parent=5 // pred_check
        %p1062 = pneg %p1061
      $region46: #{tpu_custom_call.1} parent=5 // pred_check_branch
        %1064 = sbr.rel (%p1062) target = $region48
      $region47: #{tpu_custom_call.1} parent=5 // pred_region
        %s1065 = ssub.s32 %s14, 2
        // Predicated region
        $region49: #{tpu_custom_call.1} parent=47 // pred_check
          %p1066 = pneg %p176
        $region50: #{tpu_custom_call.1} parent=47 // pred_check_branch
          %1068 = sbr.rel (%p1066) target = $region52
        $region51: #{tpu_custom_call.1} parent=47 // pred_region
          %s1069 = sand.u32 %s161, 1
          %s1070 = scalar_lea.sflag [#allocation3], %s1069
          %s1071 = sand.u32 %s161, 1
          %s1072 = smul.addr %s1071, 64
          %s1073 = scalar_lea.vmem [#allocation2], %s1072
          %1074 = dma.done %s1070, 1024
        $region52: #{tpu_custom_call.1} parent=47 // pred_fallthru
          _
      $region48: #{tpu_custom_call.1} parent=5 // pred_fallthru
        _
    $region6: #{tpu_custom_call.1} parent=1 // loop_footer
      %s18 = sadd.s32 1, %s14
    $region7: #{tpu_custom_call.1} parent=1 // loop_footer_branch
      %13 = sbr.rel target = $region3
    $region8: #{tpu_custom_call.1} parent=1 // loop_exit
      _
    %1075 = vsyncpa [#allocation3], 1
    %s1076 = scalar_lea.sflag [#allocation3], 1
    %1077 = vsyncpa %s1076, 1

</llo_original>
